<compile_context>
chip_gen: v6e
topology: v6e:2x2x1
jax: 0.10.0
libtpu: 0.0.40
codegen_flags: <defaults>
</compile_context>

<pallas_src>
import functools

import jax
import jax.numpy as jnp
from jax.experimental import pallas as pl
from jax.experimental.pallas import tpu as pltpu


def qnetwork_kernel(x_ref, w1_ref, b1_ref, w2_ref, b2_ref, w3_ref, b3_ref, out_ref):
    """Fused 3-layer MLP on one batch tile: relu(x@W1+b1) -> relu(.@W2+b2) -> .@W3+b3."""
    x = x_ref[...].astype(w1_ref.dtype)                      # bf16 for the MXU
    h1 = jnp.dot(x, w1_ref[...], preferred_element_type=jnp.float32) + b1_ref[...]
    h1 = jnp.maximum(h1, 0.0)                                # f32 bias add / ReLU
    h2 = (
        jnp.dot(h1.astype(w2_ref.dtype), w2_ref[...], preferred_element_type=jnp.float32)
        + b2_ref[...]
    )
    h2 = jnp.maximum(h2, 0.0)
    out = (
        jnp.dot(h2.astype(w3_ref.dtype), w3_ref[...], preferred_element_type=jnp.float32)
        + b3_ref[...]
    )
    out_ref[...] = out.astype(out_ref.dtype)


def _round_up(n, m):
    return ((n + m - 1) // m) * m


def _choose_tile_b(batch, tile_b):
    """Batch tile: multiple of 8 (or == batch), minimal tile waste, and >= 2
    even grid steps whenever batch >= 16 so v7x megacore can shard the axis."""
    steps = pl.cdiv(batch, max(8, tile_b))
    if batch >= 16:
        steps = max(steps, 2)
        steps = 2 * ((steps + 1) // 2)       # even number of grid steps
    tb = _round_up(pl.cdiv(batch, steps), 8)
    if tb >= batch:
        return batch                          # single full-batch tile is always legal
    return tb


def prepare_params(w1, b1, w2, b2, w3, b3, weight_dtype=jnp.bfloat16):
    """One-time param prep (call OUTSIDE the step loop): weights -> bf16 for the
    HBM->VMEM stream, biases -> (1, out) f32 for exact accumulation."""
    prep_w = lambda w: jnp.asarray(w, weight_dtype)
    prep_b = lambda b: jnp.asarray(b, jnp.float32).reshape(1, -1)
    return (prep_w(w1), prep_b(b1), prep_w(w2), prep_b(b2), prep_w(w3), prep_b(b3))


@functools.partial(jax.jit, static_argnames=("tile_b",))
def qnetwork_forward(x, w1, b1, w2, b2, w3, b3, *, tile_b=512):
    batch, state_size = x.shape
    fc1_units = w1.shape[1]
    fc2_units = w2.shape[1]
    action_size = w3.shape[1]

    tb = _choose_tile_b(batch, tile_b)
    grid = (pl.cdiv(batch, tb),)

    flops = 2 * batch * (
        state_size * fc1_units + fc1_units * fc2_units + fc2_units * action_size
    )
    bytes_accessed = (
        batch * state_size * x.dtype.itemsize
        + w1.size * w1.dtype.itemsize + b1.size * b1.dtype.itemsize
        + w2.size * w2.dtype.itemsize + b2.size * b2.dtype.itemsize
        + w3.size * w3.dtype.itemsize + b3.size * b3.dtype.itemsize
        + batch * action_size * 4
    )

    return pl.pallas_call(
        qnetwork_kernel,
        out_shape=jax.ShapeDtypeStruct((batch, action_size), jnp.float32),
        grid=grid,
        in_specs=[
            pl.BlockSpec((tb, state_size), lambda i: (i, 0)),         # x: streamed tiles
            pl.BlockSpec((state_size, fc1_units), lambda i: (0, 0)),  # weights: VMEM-resident
            pl.BlockSpec((1, fc1_units), lambda i: (0, 0)),
            pl.BlockSpec((fc1_units, fc2_units), lambda i: (0, 0)),
            pl.BlockSpec((1, fc2_units), lambda i: (0, 0)),
            pl.BlockSpec((fc2_units, action_size), lambda i: (0, 0)),
            pl.BlockSpec((1, action_size), lambda i: (0, 0)),
        ],
        out_specs=pl.BlockSpec((tb, action_size), lambda i: (i, 0)),
        compiler_params=pltpu.CompilerParams(
            dimension_semantics=("parallel",),                        # megacore on v7x
        ),
        cost_estimate=pl.CostEstimate(
            flops=flops, transcendentals=0, bytes_accessed=bytes_accessed
        ),
    )(x, w1, b1, w2, b2, w3, b3)


def init_linear_params(key, fan_in, fan_out):
    """Deterministic init mimicking PyTorch nn.Linear default (uniform +-1/sqrt(fan_in)).
    Weights stored as (in, out) so the kernel computes x @ W (== x @ W_pt.T)."""
    kw, kb = jax.random.split(key)
    bound = 1.0 / jnp.sqrt(jnp.float32(fan_in))
    w = jax.random.uniform(kw, (fan_in, fan_out), jnp.float32, -bound, bound)
    b = jax.random.uniform(kb, (fan_out,), jnp.float32, -bound, bound)
    return w, b


def reference_forward(x, w1, b1, w2, b2, w3, b3):
    h1 = jnp.maximum(x @ w1 + b1, 0.0)
    h2 = jnp.maximum(h1 @ w2 + b2, 0.0)
    return h2 @ w3 + b3


if __name__ == "__main__":
    # Banana env: state_size=37, action_size=4; hidden sizes from the module defaults.
    batch, state_size, action_size = 8, 37, 4
    fc1_units, fc2_units = 128, 64

    key = jax.random.PRNGKey(0)
    k_x, k1, k2, k3 = jax.random.split(key, 4)

    x = jax.random.normal(k_x, (batch, state_size), jnp.float32)
    w1, b1 = init_linear_params(k1, state_size, fc1_units)
    w2, b2 = init_linear_params(k2, fc1_units, fc2_units)
    w3, b3 = init_linear_params(k3, fc2_units, action_size)

    params = prepare_params(w1, b1, w2, b2, w3, b3)   # bf16 weights, done once

    out = jax.block_until_ready(qnetwork_forward(x, *params))
    ref = reference_forward(x, w1, b1, w2, b2, w3, b3)
    assert out.shape == (batch, action_size)
    assert jnp.allclose(out, ref, atol=2e-2, rtol=2e-2), float(jnp.max(jnp.abs(out - ref)))

    # Multi-tile path: batch not divisible by the tile, >= 2 even grid steps,
    # non-multiple-of-8 user tile_b handled by the tile chooser.
    big_batch = 300
    xb = jax.random.normal(k_x, (big_batch, state_size), jnp.float32)
    out_b = jax.block_until_ready(qnetwork_forward(xb, *params, tile_b=100))
    ref_b = reference_forward(xb, w1, b1, w2, b2, w3, b3)
    assert out_b.shape == (big_batch, action_size)
    assert jnp.allclose(out_b, ref_b, atol=2e-2, rtol=2e-2)

    print("KERNEL_OK")
</pallas_src>

<mosaic_0001>
module attributes {stable_mosaic.version = 11 : i64} {
  func.func @qnetwork_kernel(%arg0: i32, %arg1: memref<8x37xf32, #tpu.memory_space<vmem>>, %arg2: memref<37x128xbf16, #tpu.memory_space<vmem>>, %arg3: memref<1x128xf32, #tpu.memory_space<vmem>>, %arg4: memref<128x64xbf16, #tpu.memory_space<vmem>>, %arg5: memref<1x64xf32, #tpu.memory_space<vmem>>, %arg6: memref<64x4xbf16, #tpu.memory_space<vmem>>, %arg7: memref<1x4xf32, #tpu.memory_space<vmem>>, %arg8: memref<8x4xf32, #tpu.memory_space<vmem>>) attributes {dimension_semantics = [#tpu.dimension_semantics<parallel>], iteration_bounds = array<i64: 1>, scalar_prefetch = 0 : i64, scratch_operands = 0 : i64, tpu.core_type = #tpu.core_type<tc>, window_params = [{transform_indices = @transform_0, window_bounds = array<i64: 8, 37>}, {pipeline_mode = #tpu.pipeline_mode<synchronous>, transform_indices = @transform_1, window_bounds = array<i64: 37, 128>}, {pipeline_mode = #tpu.pipeline_mode<synchronous>, transform_indices = @transform_2, window_bounds = array<i64: 1, 128>}, {pipeline_mode = #tpu.pipeline_mode<synchronous>, transform_indices = @transform_3, window_bounds = array<i64: 128, 64>}, {pipeline_mode = #tpu.pipeline_mode<synchronous>, transform_indices = @transform_4, window_bounds = array<i64: 1, 64>}, {pipeline_mode = #tpu.pipeline_mode<synchronous>, transform_indices = @transform_5, window_bounds = array<i64: 64, 4>}, {pipeline_mode = #tpu.pipeline_mode<synchronous>, transform_indices = @transform_6, window_bounds = array<i64: 1, 4>}, {transform_indices = @transform_7, window_bounds = array<i64: 8, 4>}]} {
    %c0 = arith.constant 0 : index
    %c0_0 = arith.constant 0 : index
    %0 = vector.load %arg1[%c0, %c0_0] : memref<8x37xf32, #tpu.memory_space<vmem>>, vector<8x37xf32>
    %1 = arith.truncf %0 : vector<8x37xf32> to vector<8x37xbf16>
    %c0_1 = arith.constant 0 : index
    %c0_2 = arith.constant 0 : index
    %2 = vector.load %arg2[%c0_1, %c0_2] : memref<37x128xbf16, #tpu.memory_space<vmem>>, vector<37x128xbf16>
    %cst = arith.constant dense<0.000000e+00> : vector<8x128xf32>
    %3 = tpu.matmul %1, %2, %cst {dimension_numbers = #tpu.dot_dimension_numbers<[1], [0], [0], [1], [0, 0, 1, 1], [], []>} : vector<8x37xbf16>, vector<37x128xbf16>, vector<8x128xf32> -> vector<8x128xf32>
    %c0_3 = arith.constant 0 : index
    %c0_4 = arith.constant 0 : index
    %4 = vector.load %arg3[%c0_3, %c0_4] : memref<1x128xf32, #tpu.memory_space<vmem>>, vector<1x128xf32>
    %5 = vector.broadcast %4 : vector<1x128xf32> to vector<8x128xf32>
    %6 = arith.addf %3, %5 : vector<8x128xf32>
    %cst_5 = arith.constant 0.000000e+00 : f32
    %7 = vector.broadcast %cst_5 : f32 to vector<8x128xf32>
    %8 = arith.maximumf %6, %7 : vector<8x128xf32>
    %9 = arith.truncf %8 : vector<8x128xf32> to vector<8x128xbf16>
    %c0_6 = arith.constant 0 : index
    %c0_7 = arith.constant 0 : index
    %10 = vector.load %arg4[%c0_6, %c0_7] : memref<128x64xbf16, #tpu.memory_space<vmem>>, vector<128x64xbf16>
    %cst_8 = arith.constant dense<0.000000e+00> : vector<8x64xf32>
    %11 = tpu.matmul %9, %10, %cst_8 {dimension_numbers = #tpu.dot_dimension_numbers<[1], [0], [0], [1], [0, 0, 1, 1], [], []>} : vector<8x128xbf16>, vector<128x64xbf16>, vector<8x64xf32> -> vector<8x64xf32>
    %c0_9 = arith.constant 0 : index
    %c0_10 = arith.constant 0 : index
    %12 = vector.load %arg5[%c0_9, %c0_10] : memref<1x64xf32, #tpu.memory_space<vmem>>, vector<1x64xf32>
    %13 = vector.broadcast %12 : vector<1x64xf32> to vector<8x64xf32>
    %14 = arith.addf %11, %13 : vector<8x64xf32>
    %cst_11 = arith.constant 0.000000e+00 : f32
    %15 = vector.broadcast %cst_11 : f32 to vector<8x64xf32>
    %16 = arith.maximumf %14, %15 : vector<8x64xf32>
    %17 = arith.truncf %16 : vector<8x64xf32> to vector<8x64xbf16>
    %c0_12 = arith.constant 0 : index
    %c0_13 = arith.constant 0 : index
    %18 = vector.load %arg6[%c0_12, %c0_13] : memref<64x4xbf16, #tpu.memory_space<vmem>>, vector<64x4xbf16>
    %cst_14 = arith.constant dense<0.000000e+00> : vector<8x4xf32>
    %19 = tpu.matmul %17, %18, %cst_14 {dimension_numbers = #tpu.dot_dimension_numbers<[1], [0], [0], [1], [0, 0, 1, 1], [], []>} : vector<8x64xbf16>, vector<64x4xbf16>, vector<8x4xf32> -> vector<8x4xf32>
    %c0_15 = arith.constant 0 : index
    %c0_16 = arith.constant 0 : index
    %20 = vector.load %arg7[%c0_15, %c0_16] : memref<1x4xf32, #tpu.memory_space<vmem>>, vector<1x4xf32>
    %21 = vector.broadcast %20 : vector<1x4xf32> to vector<8x4xf32>
    %22 = arith.addf %19, %21 : vector<8x4xf32>
    %c0_17 = arith.constant 0 : index
    %c0_18 = arith.constant 0 : index
    %23 = vector.load %arg8[%c0_17, %c0_18] : memref<8x4xf32, #tpu.memory_space<vmem>>, vector<8x4xf32>
    tpu.vector_store %arg8[%c0_17, %c0_18], %22 {strides = array<i32>} : memref<8x4xf32, #tpu.memory_space<vmem>>, vector<8x4xf32>,
    return
  }
  func.func @transform_0(%arg0: i32) -> (i32, i32) {
    %c0_i32 = arith.constant 0 : i32
    %c0_i32_0 = arith.constant 0 : i32
    return %arg0, %c0_i32 : i32, i32
  }
  func.func @transform_1(%arg0: i32) -> (i32, i32) {
    %c0_i32 = arith.constant 0 : i32
    %c0_i32_0 = arith.constant 0 : i32
    %c0_i32_1 = arith.constant 0 : i32
    return %c0_i32, %c0_i32_0 : i32, i32
  }
  func.func @transform_2(%arg0: i32) -> (i32, i32) {
    %c0_i32 = arith.constant 0 : i32
    %c0_i32_0 = arith.constant 0 : i32
    %c0_i32_1 = arith.constant 0 : i32
    return %c0_i32, %c0_i32_0 : i32, i32
  }
  func.func @transform_3(%arg0: i32) -> (i32, i32) {
    %c0_i32 = arith.constant 0 : i32
    %c0_i32_0 = arith.constant 0 : i32
    %c0_i32_1 = arith.constant 0 : i32
    return %c0_i32, %c0_i32_0 : i32, i32
  }
  func.func @transform_4(%arg0: i32) -> (i32, i32) {
    %c0_i32 = arith.constant 0 : i32
    %c0_i32_0 = arith.constant 0 : i32
    %c0_i32_1 = arith.constant 0 : i32
    return %c0_i32, %c0_i32_0 : i32, i32
  }
  func.func @transform_5(%arg0: i32) -> (i32, i32) {
    %c0_i32 = arith.constant 0 : i32
    %c0_i32_0 = arith.constant 0 : i32
    %c0_i32_1 = arith.constant 0 : i32
    return %c0_i32, %c0_i32_0 : i32, i32
  }
  func.func @transform_6(%arg0: i32) -> (i32, i32) {
    %c0_i32 = arith.constant 0 : i32
    %c0_i32_0 = arith.constant 0 : i32
    %c0_i32_1 = arith.constant 0 : i32
    return %c0_i32, %c0_i32_0 : i32, i32
  }
  func.func @transform_7(%arg0: i32) -> (i32, i32) {
    %c0_i32 = arith.constant 0 : i32
    %c0_i32_0 = arith.constant 0 : i32
    return %arg0, %c0_i32 : i32, i32
  }
}

</mosaic_0001>

<llo_original>
// kernel: qnetwork_forward.1
$region0: #{qnetwork_forward.1}
  #allocation0 [shape = 'u32[]', space=smem, size = 0x4, offset = 0x4, fixed_abs, tag = 'smem constant byte address 0x4 - core index']
  #allocation1 [shape = 'u32[144,128]{1,0:T(1,128)}', space=vmem, size = 0x12000, scoped, tag = 'internal scratch']
  %s0 = inlined_call_operand.vmem [shape: f32[8,37], index: 0, kind: input, shape index: {}]
  %s1 = inlined_call_operand.vmem [shape: bf16[37,128], index: 1, kind: input, shape index: {}]
  %s2 = inlined_call_operand.vmem [shape: f32[1,128], index: 2, kind: input, shape index: {}]
  %s3 = inlined_call_operand.vmem [shape: bf16[128,64], index: 3, kind: input, shape index: {}]
  %s4 = inlined_call_operand.vmem [shape: f32[1,64], index: 4, kind: input, shape index: {}]
  %s5 = inlined_call_operand.vmem [shape: bf16[64,4], index: 5, kind: input, shape index: {}]
  %s6 = inlined_call_operand.vmem [shape: f32[1,4], index: 6, kind: input, shape index: {}]
  %s7 = inlined_call_operand.vmem [shape: f32[8,4], index: 7, kind: output, shape index: {}]
  %s8 = sld [smem:[#allocation0]]
  $region38: #{qnetwork_forward.1} parent=0
    _
  %s10 = ssub.s32 1, %s8
  %s11 = scalar_select 0, %s10, %s8
  // Predicated region
  $region2: #{qnetwork_forward.1} parent=0 // pred_check
    _
  $region3: #{qnetwork_forward.1} parent=0 // pred_check_branch
    %13 = sbr.rel (0) target = $region5
  $region4: #{qnetwork_forward.1} parent=0 // pred_region
    _
  $region5: #{qnetwork_forward.1} parent=0 // pred_fallthru
    _
  // Predicated region
  $region6: #{qnetwork_forward.1} parent=0 // pred_check
    _
  $region7: #{qnetwork_forward.1} parent=0 // pred_check_branch
    %15 = sbr.rel (0) target = $region9
  $region8: #{qnetwork_forward.1} parent=0 // pred_region
    _
  $region9: #{qnetwork_forward.1} parent=0 // pred_fallthru
    _
  // Predicated region
  $region10: #{qnetwork_forward.1} parent=0 // pred_check
    _
  $region11: #{qnetwork_forward.1} parent=0 // pred_check_branch
    %17 = sbr.rel (0) target = $region13
  $region12: #{qnetwork_forward.1} parent=0 // pred_region
    _
  $region13: #{qnetwork_forward.1} parent=0 // pred_fallthru
    _
  // Predicated region
  $region14: #{qnetwork_forward.1} parent=0 // pred_check
    _
  $region15: #{qnetwork_forward.1} parent=0 // pred_check_branch
    %19 = sbr.rel (0) target = $region17
  $region16: #{qnetwork_forward.1} parent=0 // pred_region
    _
  $region17: #{qnetwork_forward.1} parent=0 // pred_fallthru
    _
  // Predicated region
  $region18: #{qnetwork_forward.1} parent=0 // pred_check
    _
  $region19: #{qnetwork_forward.1} parent=0 // pred_check_branch
    %21 = sbr.rel (0) target = $region21
  $region20: #{qnetwork_forward.1} parent=0 // pred_region
    _
  $region21: #{qnetwork_forward.1} parent=0 // pred_fallthru
    _
  // Predicated region
  $region22: #{qnetwork_forward.1} parent=0 // pred_check
    _
  $region23: #{qnetwork_forward.1} parent=0 // pred_check_branch
    %23 = sbr.rel (0) target = $region25
  $region24: #{qnetwork_forward.1} parent=0 // pred_region
    _
  $region25: #{qnetwork_forward.1} parent=0 // pred_fallthru
    _
  // Predicated region
  $region26: #{qnetwork_forward.1} parent=0 // pred_check
    _
  $region27: #{qnetwork_forward.1} parent=0 // pred_check_branch
    %25 = sbr.rel (0) target = $region29
  $region28: #{qnetwork_forward.1} parent=0 // pred_region
    _
  $region29: #{qnetwork_forward.1} parent=0 // pred_fallthru
    _
  %v27 = vld [vmem:[%s0] sm:$0xff]
  %v28 = vpack.c.bf16 %v27, %v27
  %v29 = vld [vmem:[%s1] sm:$0xf]
  %v30 = vld [vmem:[%s1 + $0x4] sm:$0xf]
  %v31 = vld [vmem:[%s1 + $0x8] sm:$0xf]
  %v32 = vld [vmem:[%s1 + $0xc] sm:$0xf]
  %v33 = vld [vmem:[%s1 + $0x10] sm:$0x7]
  %v34 = vld [vmem:[%s2] sm:$0x1]
  %v36 = vlaneseq
  %v37 = vshrl.u32 %v36, 7
  %v38 = vsub.s32 0, %v37
  %v39 = vrot.slane %v34, %v38
  %v46 = vunpack.c.l.b16 %v29
  %v47 = vunpack.c.l.b16 %v30
  %v48 = vunpack.c.l.b16 %v31
  %v49 = vunpack.c.l.b16 %v32
  %v50 = vunpack.c.l.b16 %v33
  %v51 = vpack.c.b16 %v47, %v46
  %v52 = vpack.c.b16 %v49, %v48
  %v53 = vpack.c.b16 %v50, %v50
  %vm56 = vcmask 302080
  %v58 = vsel %vm56, %v28, 0
  %vm60 = vcmask 1041408
  %vm61 = vcmask 1042432
  %v62 = vsel %vm60, 4294967295, 65535
  %v63 = vsel %vm61, %v62, 0
  %v65 = vand.u32 %v53, %v63
  %67 = vmatprep.subr.bf16.mxu0 0
  %68 = vmatpush1.bf16.msra.mxu0 0
  %69 = vmatprep.subr.bf16.mxu0 0
  %70 = vmatpush1.bf16.msra.mxu0 0
  %71 = vmatprep.subr.bf16.mxu0 0
  %72 = vmatpush1.bf16.msra.mxu0 0
  %73 = vmatprep.subr.bf16.mxu0 0
  %74 = vmatpush1.bf16.msra.mxu0 0
  %75 = vmatprep.subr.bf16.mxu0 0
  %76 = vmatpush1.bf16.msra.mxu0 0
  %77 = vmatprep.subr.bf16.mxu0 0
  %78 = vmatpush1.bf16.msra.mxu0 %v65
  %79 = vmatprep.subr.bf16.mxu0 0
  %80 = vmatpush1.bf16.msra.mxu0 %v52
  %81 = vmatprep.subr.bf16.mxu0 0
  %82 = vmatpush1.bf16.msra.mxu0 %v51
  %83 = vmatprep.subr.bf16.mxu0 0
  %84 = vmatpush2.bf16.msra.mxu0 0
  %85 = vmatprep.subr.bf16.mxu0 0
  %86 = vmatpush2.bf16.msra.mxu0 0
  %87 = vmatprep.subr.bf16.mxu0 0
  %88 = vmatpush2.bf16.msra.mxu0 0
  %89 = vmatprep.subr.bf16.mxu0 0
  %90 = vmatpush2.bf16.msra.mxu0 0
  %91 = vmatprep.subr.bf16.mxu0 0
  %92 = vmatpush2.bf16.msra.mxu0 0
  %93 = vmatprep.subr.bf16.mxu0 0
  %94 = vmatpush2.bf16.msra.mxu0 0
  %95 = vmatprep.subr.bf16.mxu0 0
  %96 = vmatpush2.bf16.msra.mxu0 0
  %97 = vmatprep.subr.bf16.mxu0 0
  %98 = vmatpush2.bf16.msra.mxu0 0
  %99 = vmatprep.mubr.bf16.mxu0 0
  %100 = vmatmul.mubr.bf16.gmra.mxu0 %v58
  %v101 = vpop.f32.mrf.mxu0
  %v102 = vadd.f32 %v39, %v101
  %v103 = vpop.f32.mrf.mxu0
  %v104 = vpop.f32.mrf.mxu0
  %v105 = vpop.f32.mrf.mxu0
  %106 = vdwg.mxu0
  %v107 = vmax.f32 %v102, 0.0
  %v108 = vpack.c.bf16 %v107, %v107
  %v109 = vld [vmem:[%s3] sm:$0xf]
  %v110 = vld [vmem:[%s3 + $0x4] sm:$0xf]
  %v111 = vld [vmem:[%s3 + $0x8] sm:$0xf]
  %v112 = vld [vmem:[%s3 + $0xc] sm:$0xf]
  %v113 = vld [vmem:[%s3 + $0x10] sm:$0xf]
  %v114 = vld [vmem:[%s3 + $0x14] sm:$0xf]
  %v115 = vld [vmem:[%s3 + $0x18] sm:$0xf]
  %v116 = vld [vmem:[%s3 + $0x1c] sm:$0xf]
  %v117 = vld [vmem:[%s3 + $0x20] sm:$0xf]
  %v118 = vld [vmem:[%s3 + $0x24] sm:$0xf]
  %v119 = vld [vmem:[%s3 + $0x28] sm:$0xf]
  %v120 = vld [vmem:[%s3 + $0x2c] sm:$0xf]
  %v121 = vld [vmem:[%s3 + $0x30] sm:$0xf]
  %v122 = vld [vmem:[%s3 + $0x34] sm:$0xf]
  %v123 = vld [vmem:[%s3 + $0x38] sm:$0xf]
  %v124 = vld [vmem:[%s3 + $0x3c] sm:$0xf]
  %v125 = vld [vmem:[%s4] sm:$0x1]
  %v127 = vlaneseq
  %v128 = vshrl.u32 %v127, 7
  %v129 = vsub.s32 0, %v128
  %v130 = vrot.slane %v125, %v129
  %v148 = vunpack.c.l.b16 %v109
  %v149 = vunpack.c.l.b16 %v110
  %v150 = vunpack.c.l.b16 %v111
  %v151 = vunpack.c.l.b16 %v112
  %v152 = vunpack.c.l.b16 %v113
  %v153 = vunpack.c.l.b16 %v114
  %v154 = vunpack.c.l.b16 %v115
  %v155 = vunpack.c.l.b16 %v116
  %v156 = vunpack.c.l.b16 %v117
  %v157 = vunpack.c.l.b16 %v118
  %v158 = vunpack.c.l.b16 %v119
  %v159 = vunpack.c.l.b16 %v120
  %v160 = vunpack.c.l.b16 %v121
  %v161 = vunpack.c.l.b16 %v122
  %v162 = vunpack.c.l.b16 %v123
  %v163 = vunpack.c.l.b16 %v124
  %v164 = vpack.c.b16 %v149, %v148
  %v165 = vpack.c.b16 %v151, %v150
  %v166 = vpack.c.b16 %v153, %v152
  %v167 = vpack.c.b16 %v155, %v154
  %v168 = vpack.c.b16 %v157, %v156
  %v169 = vpack.c.b16 %v159, %v158
  %v170 = vpack.c.b16 %v161, %v160
  %v171 = vpack.c.b16 %v163, %v162
  %180 = vmatprep.subr.bf16.mxu0 0
  %181 = vmatpush1.bf16.msra.mxu0 %v171
  %182 = vmatprep.subr.bf16.mxu0 0
  %183 = vmatpush1.bf16.msra.mxu0 %v170
  %184 = vmatprep.subr.bf16.mxu0 0
  %185 = vmatpush1.bf16.msra.mxu0 %v169
  %186 = vmatprep.subr.bf16.mxu0 0
  %187 = vmatpush1.bf16.msra.mxu0 %v168
  %188 = vmatprep.subr.bf16.mxu0 0
  %189 = vmatpush1.bf16.msra.mxu0 %v167
  %190 = vmatprep.subr.bf16.mxu0 0
  %191 = vmatpush1.bf16.msra.mxu0 %v166
  %192 = vmatprep.subr.bf16.mxu0 0
  %193 = vmatpush1.bf16.msra.mxu0 %v165
  %194 = vmatprep.subr.bf16.mxu0 0
  %195 = vmatpush1.bf16.msra.mxu0 %v164
  %196 = vmatprep.subr.bf16.mxu0 0
  %197 = vmatpush2.bf16.msra.mxu0 0
  %198 = vmatprep.subr.bf16.mxu0 0
  %199 = vmatpush2.bf16.msra.mxu0 0
  %200 = vmatprep.subr.bf16.mxu0 0
  %201 = vmatpush2.bf16.msra.mxu0 0
  %202 = vmatprep.subr.bf16.mxu0 0
  %203 = vmatpush2.bf16.msra.mxu0 0
  %204 = vmatprep.subr.bf16.mxu0 0
  %205 = vmatpush2.bf16.msra.mxu0 0
  %206 = vmatprep.subr.bf16.mxu0 0
  %207 = vmatpush2.bf16.msra.mxu0 0
  %208 = vmatprep.subr.bf16.mxu0 0
  %209 = vmatpush2.bf16.msra.mxu0 0
  %210 = vmatprep.subr.bf16.mxu0 0
  %211 = vmatpush2.bf16.msra.mxu0 0
  %212 = vmatprep.mubr.bf16.mxu0 0
  %213 = vmatmul.mubr.bf16.gmra.mxu0 %v108
  %v214 = vpop.f32.mrf.mxu0
  %v215 = vadd.f32 %v130, %v214
  %v216 = vpop.f32.mrf.mxu0
  %v217 = vpop.f32.mrf.mxu0
  %v218 = vpop.f32.mrf.mxu0
  %219 = vdwg.mxu0
  %v220 = vmax.f32 %v215, 0.0
  %v221 = vpack.c.bf16 %v220, %v220
  %v222 = vld [vmem:[%s5] sm:$0xf]
  %v223 = vld [vmem:[%s5 + $0x4] sm:$0xf]
  %v224 = vld [vmem:[%s5 + $0x8] sm:$0xf]
  %v225 = vld [vmem:[%s5 + $0xc] sm:$0xf]
  %v226 = vld [vmem:[%s5 + $0x10] sm:$0xf]
  %v227 = vld [vmem:[%s5 + $0x14] sm:$0xf]
  %v228 = vld [vmem:[%s5 + $0x18] sm:$0xf]
  %v229 = vld [vmem:[%s5 + $0x1c] sm:$0xf]
  %v230 = vld [vmem:[%s6] sm:$0x1]
  %v232 = vlaneseq
  %v233 = vshrl.u32 %v232, 7
  %v234 = vsub.s32 0, %v233
  %v235 = vrot.slane %v230, %v234
  %v245 = vunpack.c.l.b16 %v222
  %v246 = vunpack.c.l.b16 %v223
  %v247 = vunpack.c.l.b16 %v224
  %v248 = vunpack.c.l.b16 %v225
  %v249 = vunpack.c.l.b16 %v226
  %v250 = vunpack.c.l.b16 %v227
  %v251 = vunpack.c.l.b16 %v228
  %v252 = vunpack.c.l.b16 %v229
  %v253 = vpack.c.b16 %v246, %v245
  %v254 = vpack.c.b16 %v248, %v247
  %v255 = vpack.c.b16 %v250, %v249
  %v256 = vpack.c.b16 %v252, %v251
  %vm261 = vcmask 523264
  %v263 = vsel %vm261, %v221, 0
  %265 = vmatprep.subr.bf16.mxu0 0
  %266 = vmatpush1.bf16.msra.mxu0 0
  %267 = vmatprep.subr.bf16.mxu0 0
  %268 = vmatpush1.bf16.msra.mxu0 0
  %269 = vmatprep.subr.bf16.mxu0 0
  %270 = vmatpush1.bf16.msra.mxu0 0
  %271 = vmatprep.subr.bf16.mxu0 0
  %272 = vmatpush1.bf16.msra.mxu0 0
  %273 = vmatprep.subr.bf16.mxu0 0
  %274 = vmatpush1.bf16.msra.mxu0 %v256
  %275 = vmatprep.subr.bf16.mxu0 0
  %276 = vmatpush1.bf16.msra.mxu0 %v255
  %277 = vmatprep.subr.bf16.mxu0 0
  %278 = vmatpush1.bf16.msra.mxu0 %v254
  %279 = vmatprep.subr.bf16.mxu0 0
  %280 = vmatpush1.bf16.msra.mxu0 %v253
  %281 = vmatprep.subr.bf16.mxu0 0
  %282 = vmatpush2.bf16.msra.mxu0 0
  %283 = vmatprep.subr.bf16.mxu0 0
  %284 = vmatpush2.bf16.msra.mxu0 0
  %285 = vmatprep.subr.bf16.mxu0 0
  %286 = vmatpush2.bf16.msra.mxu0 0
  %287 = vmatprep.subr.bf16.mxu0 0
  %288 = vmatpush2.bf16.msra.mxu0 0
  %289 = vmatprep.subr.bf16.mxu0 0
  %290 = vmatpush2.bf16.msra.mxu0 0
  %291 = vmatprep.subr.bf16.mxu0 0
  %292 = vmatpush2.bf16.msra.mxu0 0
  %293 = vmatprep.subr.bf16.mxu0 0
  %294 = vmatpush2.bf16.msra.mxu0 0
  %295 = vmatprep.subr.bf16.mxu0 0
  %296 = vmatpush2.bf16.msra.mxu0 0
  %297 = vmatprep.mubr.bf16.mxu0 0
  %298 = vmatmul.mubr.bf16.gmra.mxu0 %v263
  %v299 = vpop.f32.mrf.mxu0
  %v300 = vadd.f32 %v235, %v299
  %v301 = vpop.f32.mrf.mxu0
  %v302 = vpop.f32.mrf.mxu0
  %v303 = vpop.f32.mrf.mxu0
  %304 = vdwg.mxu0
  %vm305 = vcmask 31744
  %306 = vst.msk [vmem:[%s7] sm:$0xff] %vm305, %v300
  // Predicated region
  $region30: #{qnetwork_forward.1} parent=0 // pred_check
    _
  $region31: #{qnetwork_forward.1} parent=0 // pred_check_branch
    %308 = sbr.rel (0) target = $region33
  $region32: #{qnetwork_forward.1} parent=0 // pred_region
    _
  $region33: #{qnetwork_forward.1} parent=0 // pred_fallthru
    _
  // Predicated region
  $region34: #{qnetwork_forward.1} parent=0 // pred_check
    _
  $region35: #{qnetwork_forward.1} parent=0 // pred_check_branch
    %310 = sbr.rel (0) target = $region37
  $region36: #{qnetwork_forward.1} parent=0 // pred_region
    _
  $region37: #{qnetwork_forward.1} parent=0 // pred_fallthru
    _

</llo_original>
